<compile_context>
chip_gen: v7x
topology: tpu7x:2x2x1
jax: 0.10.0
libtpu: 0.0.40
codegen_flags: <defaults>
</compile_context>

<pallas_src>
import functools

import jax
import jax.numpy as jnp
from jax.experimental import pallas as pl
from jax.experimental.pallas import tpu as pltpu


def _round_up(x, m):
    return ((x + m - 1) // m) * m


def _pad2d(x, rows, cols):
    return jnp.pad(x, ((0, rows - x.shape[0]), (0, cols - x.shape[1])))


def _nbytes(shape, dtype):
    n = 1
    for s in shape:
        n *= int(s)
    return n * jnp.dtype(dtype).itemsize


def _vmem_limit_bytes(block_bytes, scratch_bytes):
    """Scoped-VMEM budget from actual block sizes (pipeline blocks are
    double-buffered) with generous margin; capped below v7x's 64 MiB VMEM."""
    need = 2 * sum(block_bytes) + scratch_bytes
    return int(min(48 << 20, max(16 << 20, 2 * need + (4 << 20))))


def build_adjacency_counts(edge_index, num_nodes):
    """Unnormalized dense adjacency counts + exact f32 reciprocal in-degree.

    A[i, j] = #edges j->i  (exact small integers, safe to store in bf16);
    inv_deg[i] = 1 / max(in_degree(i), 1)  (applied in the kernel epilogue).
    """
    src, dst = edge_index[0], edge_index[1]
    a = jnp.zeros((num_nodes, num_nodes), jnp.float32).at[dst, src].add(1.0)
    deg = a.sum(axis=1, keepdims=True)
    inv_deg = 1.0 / jnp.maximum(deg, 1.0)
    return a, inv_deg


# --------------------------------------------------------------------------
# Kernel 1: per-layer projection  hWl = h @ Wl ,  hr = h @ Wr + b
# --------------------------------------------------------------------------
def _proj_kernel(h_ref, wl_ref, wr_ref, b_ref, hwl_ref, hr_ref):
    h = h_ref[...]
    hwl_ref[...] = jnp.dot(h, wl_ref[...],
                           preferred_element_type=jnp.float32).astype(hwl_ref.dtype)
    hr = jnp.dot(h, wr_ref[...], preferred_element_type=jnp.float32) + b_ref[...]
    hr_ref[...] = hr.astype(hr_ref.dtype)


def project_layer(h_pad, wl_pad, wr_pad, b_pad, *, tile_n, hwl_dtype):
    n_pad, c_in_pad = h_pad.shape
    c_out_pad = wl_pad.shape[1]
    assert n_pad % tile_n == 0 and c_in_pad % 128 == 0 and c_out_pad % 128 == 0

    block_bytes = [
        _nbytes((tile_n, c_in_pad), h_pad.dtype),
        _nbytes((c_in_pad, c_out_pad), wl_pad.dtype),
        _nbytes((c_in_pad, c_out_pad), wr_pad.dtype),
        _nbytes((1, c_out_pad), b_pad.dtype),
        _nbytes((tile_n, c_out_pad), hwl_dtype),
        _nbytes((tile_n, c_out_pad), jnp.float32),
    ]
    cost = pl.CostEstimate(
        flops=4 * n_pad * c_in_pad * c_out_pad,
        transcendentals=0,
        bytes_accessed=(_nbytes((n_pad, c_in_pad), h_pad.dtype)
                        + 2 * _nbytes((c_in_pad, c_out_pad), wl_pad.dtype)
                        + _nbytes((1, c_out_pad), b_pad.dtype)
                        + _nbytes((n_pad, c_out_pad), hwl_dtype)
                        + _nbytes((n_pad, c_out_pad), jnp.float32)),
    )

    return pl.pallas_call(
        _proj_kernel,
        out_shape=(jax.ShapeDtypeStruct((n_pad, c_out_pad), hwl_dtype),
                   jax.ShapeDtypeStruct((n_pad, c_out_pad), jnp.float32)),
        grid_spec=pltpu.PrefetchScalarGridSpec(
            num_scalar_prefetch=0,
            grid=(n_pad // tile_n,),
            in_specs=[
                pl.BlockSpec((tile_n, c_in_pad), lambda i: (i, 0)),      # h rows
                pl.BlockSpec((c_in_pad, c_out_pad), lambda i: (0, 0)),   # Wl (full)
                pl.BlockSpec((c_in_pad, c_out_pad), lambda i: (0, 0)),   # Wr (full)
                pl.BlockSpec((1, c_out_pad), lambda i: (0, 0)),          # bias
            ],
            out_specs=[
                pl.BlockSpec((tile_n, c_out_pad), lambda i: (i, 0)),     # hWl
                pl.BlockSpec((tile_n, c_out_pad), lambda i: (i, 0)),     # hr (f32)
            ],
        ),
        compiler_params=pltpu.CompilerParams(
            dimension_semantics=("parallel",),
            vmem_limit_bytes=_vmem_limit_bytes(block_bytes, 0),
        ),
        cost_estimate=cost,
    )(h_pad, wl_pad, wr_pad, b_pad)


# --------------------------------------------------------------------------
# Kernel 2: mean aggregation  out = (A_cnt @ hWl) * inv_deg + hr  (+ tanh)
# --------------------------------------------------------------------------
def _agg_kernel(apply_tanh, tile_k, resident_hwl,
                a_ref, hwl_ref, hr_ref, invdeg_ref, out_ref, acc_ref):
    k = pl.program_id(1)

    @pl.when(k == 0)
    def _():
        acc_ref[...] = jnp.zeros_like(acc_ref)

    if resident_hwl:
        ks = pl.multiple_of(k * tile_k, 128)
        hwl = hwl_ref[pl.ds(ks, tile_k), :]
    else:
        hwl = hwl_ref[...]

    # A carries exact unnormalized edge counts -> plain sum on the MXU,
    # normalization happens once in the f32 epilogue.
    acc_ref[...] += jnp.dot(a_ref[...], hwl, preferred_element_type=jnp.float32)

    @pl.when(k == pl.num_programs(1) - 1)
    def _():
        out = acc_ref[...] * invdeg_ref[...] + hr_ref[...]   # f32 VPU work
        if apply_tanh:
            out = jnp.tanh(out)                              # f32 EUP
        out_ref[...] = out.astype(out_ref.dtype)


def aggregate_layer(a_pad, hwl, hr, inv_deg_pad, *, apply_tanh, tile_n, tile_k,
                    out_dtype, resident_hwl):
    n_pad = a_pad.shape[0]
    c_out_pad = hwl.shape[1]
    assert n_pad % tile_n == 0 and n_pad % tile_k == 0 and c_out_pad % 128 == 0
    n_row_tiles = n_pad // tile_n
    grid = (n_row_tiles, n_pad // tile_k)

    if resident_hwl:
        # Full-array block, constant index_map -> DMA'd from HBM once per layer.
        hwl_spec = pl.BlockSpec((n_pad, c_out_pad), lambda i, k: (0, 0))
        hwl_block_bytes = _nbytes((n_pad, c_out_pad), hwl.dtype)
        hwl_hbm_reads = 1
    else:
        hwl_spec = pl.BlockSpec((tile_k, c_out_pad), lambda i, k: (k, 0))
        hwl_block_bytes = _nbytes((tile_k, c_out_pad), hwl.dtype)
        hwl_hbm_reads = n_row_tiles

    block_bytes = [
        _nbytes((tile_n, tile_k), a_pad.dtype),
        hwl_block_bytes,
        _nbytes((tile_n, c_out_pad), hr.dtype),
        _nbytes((tile_n, 1), inv_deg_pad.dtype),
        _nbytes((tile_n, c_out_pad), out_dtype),
    ]
    scratch_bytes = _nbytes((tile_n, c_out_pad), jnp.float32)

    cost = pl.CostEstimate(
        flops=2 * n_pad * n_pad * c_out_pad + 3 * n_pad * c_out_pad,
        transcendentals=n_pad * c_out_pad if apply_tanh else 0,
        bytes_accessed=(_nbytes((n_pad, n_pad), a_pad.dtype)
                        + hwl_hbm_reads * _nbytes((n_pad, c_out_pad), hwl.dtype)
                        + _nbytes((n_pad, c_out_pad), hr.dtype)
                        + _nbytes((n_pad, 1), inv_deg_pad.dtype)
                        + _nbytes((n_pad, c_out_pad), out_dtype)),
    )

    return pl.pallas_call(
        functools.partial(_agg_kernel, apply_tanh, tile_k, resident_hwl),
        out_shape=jax.ShapeDtypeStruct((n_pad, c_out_pad), out_dtype),
        grid_spec=pltpu.PrefetchScalarGridSpec(
            num_scalar_prefetch=0,
            grid=grid,
            in_specs=[
                pl.BlockSpec((tile_n, tile_k), lambda i, k: (i, k)),      # A counts
                hwl_spec,                                                 # h @ Wl
                pl.BlockSpec((tile_n, c_out_pad), lambda i, k: (i, 0)),   # h @ Wr + b
                pl.BlockSpec((tile_n, 1), lambda i, k: (i, 0)),           # 1/deg (f32)
            ],
            out_specs=pl.BlockSpec((tile_n, c_out_pad), lambda i, k: (i, 0)),
            scratch_shapes=[pltpu.VMEM((tile_n, c_out_pad), jnp.float32)],
        ),
        compiler_params=pltpu.CompilerParams(
            dimension_semantics=("parallel", "arbitrary"),
            vmem_limit_bytes=_vmem_limit_bytes(block_bytes, scratch_bytes),
        ),
        cost_estimate=cost,
    )(a_pad, hwl, hr, inv_deg_pad)


# --------------------------------------------------------------------------
# Full forward
# --------------------------------------------------------------------------
def graphsage_forward(x, a_counts, inv_deg, weights_l, weights_r, biases, *,
                      tile_n=256, tile_k=512, matmul_dtype=jnp.bfloat16):
    """GraphSAGE forward (eval mode).

    weights_l[l] / weights_r[l]: [C_in_l, C_out_l] (transposed vs torch Linear.weight);
    biases[l]: [1, C_out_l] (bias of lin_l; lin_r has no bias, as in PyG SAGEConv).
    """
    n = x.shape[0]
    num_layers = len(weights_l)
    out_channels = weights_l[-1].shape[1]

    # Row tile: lane/sublane friendly and capped so the "parallel" grid axis has
    # >= 2 tiles (keeps both v7x TensorCores busy).
    tn = _round_up(min(tile_n, n), 128)
    while tn > 128 and _round_up(n, tn) // tn < 2:
        tn -= 128
    n_pad = _round_up(n, tn)

    # Reduction (k) tile for A @ hWl: largest multiple of 128 dividing n_pad, <= tile_k.
    tk_max = min(_round_up(tile_k, 128), n_pad)
    tk = 128
    for cand in range(tk_max, 127, -128):
        if n_pad % cand == 0:
            tk = cand
            break

    a_pad = _pad2d(a_counts, n_pad, n_pad).astype(matmul_dtype)   # exact 0/1/2 counts
    inv_deg_pad = _pad2d(inv_deg, n_pad, 1).astype(jnp.float32)
    h = _pad2d(x, n_pad, _round_up(x.shape[1], 128)).astype(matmul_dtype)

    for l in range(num_layers):
        c_in, c_out = weights_l[l].shape
        c_in_pad = _round_up(c_in, 128)
        c_out_pad = _round_up(c_out, 128)
        assert h.shape[1] == c_in_pad
        wl = _pad2d(weights_l[l], c_in_pad, c_out_pad).astype(matmul_dtype)
        wr = _pad2d(weights_r[l], c_in_pad, c_out_pad).astype(matmul_dtype)
        b = _pad2d(biases[l], 1, c_out_pad).astype(jnp.float32)

        hwl, hr = project_layer(h.astype(matmul_dtype), wl, wr, b,
                                tile_n=tn, hwl_dtype=matmul_dtype)

        # Keep hWl VMEM-resident (one HBM read per layer) when it fits comfortably.
        resident = (2 * _nbytes((n_pad, c_out_pad), matmul_dtype)) <= (8 << 20)

        last = (l == num_layers - 1)
        h = aggregate_layer(a_pad, hwl, hr, inv_deg_pad,
                            apply_tanh=not last, tile_n=tn, tile_k=tk,
                            out_dtype=jnp.float32 if last else matmul_dtype,
                            resident_hwl=resident)
        # Dropout between hidden layers is identity in eval mode.

    return h[:n, :out_channels]


def graphsage_ref(x, a_norm, weights_l, weights_r, biases):
    hp = jax.lax.Precision.HIGHEST
    h = x
    num_layers = len(weights_l)
    for l in range(num_layers):
        agg = jnp.dot(a_norm, h, precision=hp)
        out = (jnp.dot(agg, weights_l[l], precision=hp) + biases[l]
               + jnp.dot(h, weights_r[l], precision=hp))
        if l < num_layers - 1:
            out = jnp.tanh(out)
        h = out
    return h


def init_params(key, in_channels, hidden_channels, out_channels, num_layers):
    """U[-1/sqrt(fan_in), 1/sqrt(fan_in)] init (torch Linear default).
    Weights stored as [C_in, C_out]; only lin_l carries a bias."""
    dims = [in_channels] + [hidden_channels] * (num_layers - 1) + [out_channels]
    weights_l, weights_r, biases = [], [], []
    for l in range(num_layers):
        fan_in, fan_out = dims[l], dims[l + 1]
        key, kl, kr, kb = jax.random.split(key, 4)
        bound = 1.0 / (fan_in ** 0.5)
        weights_l.append(
            jax.random.uniform(kl, (fan_in, fan_out), jnp.float32, -bound, bound))
        weights_r.append(
            jax.random.uniform(kr, (fan_in, fan_out), jnp.float32, -bound, bound))
        biases.append(
            jax.random.uniform(kb, (1, fan_out), jnp.float32, -bound, bound))
    return weights_l, weights_r, biases


if __name__ == "__main__":
    # Small shapes consistent with the module's forward (node features + edges).
    N = 200                 # nodes (ragged vs. tile -> exercises padding, >=2 row tiles)
    E = 800                 # directed edges
    in_channels = 96
    hidden_channels = 128
    out_channels = 48
    num_layers = 3
    dropout = 0.5           # identity in eval mode (training=False)

    key = jax.random.PRNGKey(0)
    key, kx, ks, kd, kp = jax.random.split(key, 5)
    x = jax.random.normal(kx, (N, in_channels), jnp.float32)
    src = jax.random.randint(ks, (E,), 0, N)
    dst = jax.random.randint(kd, (E,), 0, N)
    edge_index = jnp.stack([src, dst])          # [2, E], row 0 = source, row 1 = target

    a_counts, inv_deg = build_adjacency_counts(edge_index, N)
    weights_l, weights_r, biases = init_params(
        kp, in_channels, hidden_channels, out_channels, num_layers)

    a_norm = a_counts * inv_deg                  # reference-only normalized adjacency
    ref = graphsage_ref(x, a_norm, weights_l, weights_r, biases)

    # f32 operand path: correctness baseline.
    out_f32 = graphsage_forward(x, a_counts, inv_deg, weights_l, weights_r, biases,
                                matmul_dtype=jnp.float32)
    out_f32 = jax.block_until_ready(out_f32)
    assert out_f32.shape == (N, out_channels)
    assert jnp.allclose(out_f32, ref, atol=2e-2, rtol=2e-2), \
        f"f32 max err {jnp.max(jnp.abs(out_f32 - ref))}"

    # bf16 operand path (default; MXU-native on v5e, v6e and v7x). Adjacency
    # counts are exact in bf16; accumulation / 1/deg / bias / tanh stay f32.
    out_bf16 = graphsage_forward(x, a_counts, inv_deg, weights_l, weights_r, biases,
                                 matmul_dtype=jnp.bfloat16)
    out_bf16 = jax.block_until_ready(out_bf16)
    assert out_bf16.shape == (N, out_channels)
    assert jnp.allclose(out_bf16, ref, atol=1e-1, rtol=1e-1), \
        f"bf16 max err {jnp.max(jnp.abs(out_bf16 - ref))}"

    print("KERNEL_OK")
</pallas_src>

<mosaic_0001>
module attributes {stable_mosaic.version = 11 : i64} {
  func.func @_proj_kernel(%arg0: i32, %arg1: memref<128x128xf32, #tpu.memory_space<vmem>>, %arg2: memref<128x128xf32, #tpu.memory_space<vmem>>, %arg3: memref<128x128xf32, #tpu.memory_space<vmem>>, %arg4: memref<1x128xf32, #tpu.memory_space<vmem>>, %arg5: memref<128x128xf32, #tpu.memory_space<vmem>>, %arg6: memref<128x128xf32, #tpu.memory_space<vmem>>) attributes {dimension_semantics = [#tpu.dimension_semantics<parallel>], iteration_bounds = array<i64: 2>, scalar_prefetch = 0 : i64, scratch_operands = 0 : i64, tpu.core_type = #tpu.core_type<tc>, window_params = [{transform_indices = @transform_0, window_bounds = array<i64: 128, 128>}, {pipeline_mode = #tpu.pipeline_mode<synchronous>, transform_indices = @transform_1, window_bounds = array<i64: 128, 128>}, {pipeline_mode = #tpu.pipeline_mode<synchronous>, transform_indices = @transform_2, window_bounds = array<i64: 128, 128>}, {pipeline_mode = #tpu.pipeline_mode<synchronous>, transform_indices = @transform_3, window_bounds = array<i64: 1, 128>}, {transform_indices = @transform_4, window_bounds = array<i64: 128, 128>}, {transform_indices = @transform_5, window_bounds = array<i64: 128, 128>}]} {
    %c0 = arith.constant 0 : index
    %c0_0 = arith.constant 0 : index
    %0 = vector.load %arg1[%c0, %c0_0] : memref<128x128xf32, #tpu.memory_space<vmem>>, vector<128x128xf32>
    %c0_1 = arith.constant 0 : index
    %c0_2 = arith.constant 0 : index
    %1 = vector.load %arg2[%c0_1, %c0_2] : memref<128x128xf32, #tpu.memory_space<vmem>>, vector<128x128xf32>
    %cst = arith.constant dense<0.000000e+00> : vector<128x128xf32>
    %2 = tpu.matmul %0, %1, %cst {dimension_numbers = #tpu.dot_dimension_numbers<[1], [0], [0], [1], [0, 0, 1, 1], [], []>} : vector<128x128xf32>, vector<128x128xf32>, vector<128x128xf32> -> vector<128x128xf32>
    %c0_3 = arith.constant 0 : index
    %c0_4 = arith.constant 0 : index
    %3 = vector.load %arg5[%c0_3, %c0_4] : memref<128x128xf32, #tpu.memory_space<vmem>>, vector<128x128xf32>
    tpu.vector_store %arg5[%c0_3, %c0_4], %2 {strides = array<i32>} : memref<128x128xf32, #tpu.memory_space<vmem>>, vector<128x128xf32>,
    %c0_5 = arith.constant 0 : index
    %c0_6 = arith.constant 0 : index
    %4 = vector.load %arg3[%c0_5, %c0_6] : memref<128x128xf32, #tpu.memory_space<vmem>>, vector<128x128xf32>
    %cst_7 = arith.constant dense<0.000000e+00> : vector<128x128xf32>
    %5 = tpu.matmul %0, %4, %cst_7 {dimension_numbers = #tpu.dot_dimension_numbers<[1], [0], [0], [1], [0, 0, 1, 1], [], []>} : vector<128x128xf32>, vector<128x128xf32>, vector<128x128xf32> -> vector<128x128xf32>
    %c0_8 = arith.constant 0 : index
    %c0_9 = arith.constant 0 : index
    %6 = vector.load %arg4[%c0_8, %c0_9] : memref<1x128xf32, #tpu.memory_space<vmem>>, vector<1x128xf32>
    %7 = vector.broadcast %6 : vector<1x128xf32> to vector<128x128xf32>
    %8 = arith.addf %5, %7 : vector<128x128xf32>
    %c0_10 = arith.constant 0 : index
    %c0_11 = arith.constant 0 : index
    %9 = vector.load %arg6[%c0_10, %c0_11] : memref<128x128xf32, #tpu.memory_space<vmem>>, vector<128x128xf32>
    tpu.vector_store %arg6[%c0_10, %c0_11], %8 {strides = array<i32>} : memref<128x128xf32, #tpu.memory_space<vmem>>, vector<128x128xf32>,
    return
  }
  func.func @transform_0(%arg0: i32) -> (i32, i32) {
    %c0_i32 = arith.constant 0 : i32
    %c0_i32_0 = arith.constant 0 : i32
    return %arg0, %c0_i32 : i32, i32
  }
  func.func @transform_1(%arg0: i32) -> (i32, i32) {
    %c0_i32 = arith.constant 0 : i32
    %c0_i32_0 = arith.constant 0 : i32
    %c0_i32_1 = arith.constant 0 : i32
    return %c0_i32, %c0_i32_0 : i32, i32
  }
  func.func @transform_2(%arg0: i32) -> (i32, i32) {
    %c0_i32 = arith.constant 0 : i32
    %c0_i32_0 = arith.constant 0 : i32
    %c0_i32_1 = arith.constant 0 : i32
    return %c0_i32, %c0_i32_0 : i32, i32
  }
  func.func @transform_3(%arg0: i32) -> (i32, i32) {
    %c0_i32 = arith.constant 0 : i32
    %c0_i32_0 = arith.constant 0 : i32
    %c0_i32_1 = arith.constant 0 : i32
    return %c0_i32, %c0_i32_0 : i32, i32
  }
  func.func @transform_4(%arg0: i32) -> (i32, i32) {
    %c0_i32 = arith.constant 0 : i32
    %c0_i32_0 = arith.constant 0 : i32
    return %arg0, %c0_i32 : i32, i32
  }
  func.func @transform_5(%arg0: i32) -> (i32, i32) {
    %c0_i32 = arith.constant 0 : i32
    %c0_i32_0 = arith.constant 0 : i32
    return %arg0, %c0_i32 : i32, i32
  }
}

</mosaic_0001>

<llo_original>
// kernel: tpu_custom_call.1
$region0: #{tpu_custom_call.1}
  #allocation0 [shape = 'u32[]', space=smem, size = 0x4, offset = 0x4, fixed_abs, tag = 'smem constant byte address 0x4 - core index']
  #allocation1 [shape = 'u32[144,128]{1,0:T(1,128)}', space=vmem, size = 0x12000, scoped, tag = 'internal scratch']
  %s0 = inlined_call_operand.hbm [shape: f32[256,128], index: 0, kind: input, shape index: {}]
  %s1 = inlined_call_operand.hbm [shape: f32[128,128], index: 1, kind: input, shape index: {}]
  %s2 = inlined_call_operand.hbm [shape: f32[128,128], index: 2, kind: input, shape index: {}]
  %s3 = inlined_call_operand.vmem [shape: f32[1,128], index: 3, kind: input, shape index: {}]
  %s4 = inlined_call_operand.hbm [shape: f32[256,128], index: 4, kind: output, shape index: {0}]
  %s5 = inlined_call_operand.hbm [shape: f32[256,128], index: 5, kind: output, shape index: {1}]
  %6 = xla_tuple %s4, %s5
  %s7 = sld [smem:[#allocation0]]
  $region69: #{tpu_custom_call.1} parent=0
    _
  %s9 = ssub.s32 1, %s7
  %s10 = scalar_select 0, %s9, %s7
  $region1: #{tpu_custom_call.1} parent=0
    #allocation2 [shape = 'u8[131072]{0}', space=vmem, size = 0x20000, scoped, tag = 'input window, operand 0']
    #allocation3 [shape = 's32[2]{0}', space=sflag, size = 0x8, scoped, tag = 'scoped memory for tpu_custom_call.1']
    #allocation4 [shape = 's32[2]{0}', space=sflag, size = 0x8, scoped, tag = 'scoped memory for tpu_custom_call.1']
    #allocation5 [shape = 'u8[65536]{0}', space=vmem, size = 0x10000, scoped, tag = 'input window, operand 1, single buffered']
    #allocation6 [shape = 's32[1]{0}', space=sflag, size = 0x4, scoped, tag = 'scoped memory for tpu_custom_call.1']
    #allocation7 [shape = 'u8[65536]{0}', space=vmem, size = 0x10000, scoped, tag = 'input window, operand 2, single buffered']
    #allocation8 [shape = 'u8[131072]{0}', space=vmem, size = 0x20000, scoped, tag = 'output window, operand 0']
    #allocation9 [shape = 'u8[131072]{0}', space=vmem, size = 0x20000, scoped, tag = 'output window, operand 1']
    #allocation10 [shape = 's32[2]{0}', space=sflag, size = 0x8, scoped, tag = 'scoped memory for tpu_custom_call.1']
    %11 = vsyncpa [#allocation3], 0
    %s12 = scalar_lea.sflag [#allocation3], 1
    %13 = vsyncpa %s12, 0
    %14 = vsyncpa [#allocation6], 0
    %15 = vsyncpa [#allocation4], 0
    %s16 = scalar_lea.sflag [#allocation4], 1
    %17 = vsyncpa %s16, 0
    %18 = vsyncpa [#allocation10], 0
    %s19 = scalar_lea.sflag [#allocation10], 1
    %20 = vsyncpa %s19, 0
    loop: start=0, step=1, limit=4
    $region2: #{tpu_custom_call.1} parent=1 // loop_pre_header
      _
    $region3: #{tpu_custom_call.1} parent=1 // loop_header
      %s22 = sphi 0, %s26
      %p23 = scmp.ge.s32.totalorder %s22, 4
      %s32 = sphi 0, %s34
      %s35 = sphi 0, %s32
      %s36 = sphi 0, %s35
      %s52 = sphi 0, %s36
      %s56 = sphi 0, %s56
      %s58 = sphi 0, %s56
      %s59 = sphi 0, %s58
      %s73 = sphi 0, %s59
      %s77 = sphi 0, %s77
      %s79 = sphi 0, %s77
      %s80 = sphi 0, %s79
      %s94 = sphi 0, %s80
      %s98 = sphi 0, %s98
      %s100 = sphi 0, %s98
      %s101 = sphi 0, %s100
      %s115 = sphi 0, %s101
      %s121 = sphi 0, %s123
      %s124 = sphi 0, %s121
      %s125 = sphi 0, %s124
      %s141 = sphi 0, %s125
      %s147 = sphi 0, %s149
      %s150 = sphi 0, %s147
      %s151 = sphi 0, %s150
      %s167 = sphi 0, %s151
    $region4: #{tpu_custom_call.1} parent=1 // loop_header_branch
      %25 = sbr.rel (%p23) target = $region8
    $region5: #{tpu_custom_call.1} parent=1 // loop_body
      %s27 = ssub.s32 %s22, 1
      %s28 = ssub.s32 %s22, 2
      %s29 = sadd.s32 %s22, 1
      %s30 = ssub.s32 %s22, %s29
      %p31 = scmp.eq.s32.totalorder %s30, 0
      %s33 = sadd.s32 %s32, 1
      %s34 = scalar_select %p31, %s32, %s33
      %p37 = pneg %p31
      %p38 = scmp.eq.s32.totalorder %s22, 1
      %p39 = por %p37, %p38
      %p40 = scmp.ne.s32.totalorder %s32, %s35
      %p41 = scmp.eq.s32.totalorder %s22, 0
      %p42 = por %p40, %p41
      %p43 = scmp.ne.s32.totalorder %s32, %s35
      %p44 = scmp.eq.s32.totalorder %s27, 1
      %p45 = por %p43, %p44
      %p46 = scmp.ne.s32.totalorder %s35, %s36
      %p47 = scmp.eq.s32.totalorder %s27, 0
      %p48 = por %p46, %p47
      %p49 = scmp.ne.s32.totalorder %s35, %s36
      %p50 = scmp.eq.s32.totalorder %s28, 1
      %p51 = por %p49, %p50
      %p53 = scmp.ne.s32.totalorder %s36, %s52
      %p54 = scmp.eq.s32.totalorder %s28, 0
      %p55 = por %p53, %p54
      %s57 = sadd.s32 %s56, 1
      %p60 = scmp.eq.s32.totalorder %s22, 1
      %p61 = scmp.ne.s32.totalorder %s56, %s58
      %p62 = scmp.eq.s32.totalorder %s22, 0
      %p63 = por %p61, %p62
      %p64 = scmp.ne.s32.totalorder %s56, %s58
      %p65 = scmp.eq.s32.totalorder %s27, 1
      %p66 = por %p64, %p65
      %p67 = scmp.ne.s32.totalorder %s58, %s59
      %p68 = scmp.eq.s32.totalorder %s27, 0
      %p69 = por %p67, %p68
      %p70 = scmp.ne.s32.totalorder %s58, %s59
      %p71 = scmp.eq.s32.totalorder %s28, 1
      %p72 = por %p70, %p71
      %p74 = scmp.ne.s32.totalorder %s59, %s73
      %p75 = scmp.eq.s32.totalorder %s28, 0
      %p76 = por %p74, %p75
      %s78 = sadd.s32 %s77, 1
      %p81 = scmp.eq.s32.totalorder %s22, 1
      %p82 = scmp.ne.s32.totalorder %s77, %s79
      %p83 = scmp.eq.s32.totalorder %s22, 0
      %p84 = por %p82, %p83
      %p85 = scmp.ne.s32.totalorder %s77, %s79
      %p86 = scmp.eq.s32.totalorder %s27, 1
      %p87 = por %p85, %p86
      %p88 = scmp.ne.s32.totalorder %s79, %s80
      %p89 = scmp.eq.s32.totalorder %s27, 0
      %p90 = por %p88, %p89
      %p91 = scmp.ne.s32.totalorder %s79, %s80
      %p92 = scmp.eq.s32.totalorder %s28, 1
      %p93 = por %p91, %p92
      %p95 = scmp.ne.s32.totalorder %s80, %s94
      %p96 = scmp.eq.s32.totalorder %s28, 0
      %p97 = por %p95, %p96
      %s99 = sadd.s32 %s98, 1
      %p102 = scmp.eq.s32.totalorder %s22, 1
      %p103 = scmp.ne.s32.totalorder %s98, %s100
      %p104 = scmp.eq.s32.totalorder %s22, 0
      %p105 = por %p103, %p104
      %p106 = scmp.ne.s32.totalorder %s98, %s100
      %p107 = scmp.eq.s32.totalorder %s27, 1
      %p108 = por %p106, %p107
      %p109 = scmp.ne.s32.totalorder %s100, %s101
      %p110 = scmp.eq.s32.totalorder %s27, 0
      %p111 = por %p109, %p110
      %p112 = scmp.ne.s32.totalorder %s100, %s101
      %p113 = scmp.eq.s32.totalorder %s28, 1
      %p114 = por %p112, %p113
      %p116 = scmp.ne.s32.totalorder %s101, %s115
      %p117 = scmp.eq.s32.totalorder %s28, 0
      %p118 = por %p116, %p117
      %s119 = ssub.s32 %s22, %s29
      %p120 = scmp.eq.s32.totalorder %s119, 0
      %s122 = sadd.s32 %s121, 1
      %s123 = scalar_select %p120, %s121, %s122
      %p126 = pneg %p120
      %p127 = scmp.eq.s32.totalorder %s22, 1
      %p128 = por %p126, %p127
      %p129 = scmp.ne.s32.totalorder %s121, %s124
      %p130 = scmp.eq.s32.totalorder %s22, 0
      %p131 = por %p129, %p130
      %p132 = scmp.ne.s32.totalorder %s121, %s124
      %p133 = scmp.eq.s32.totalorder %s27, 1
      %p134 = por %p132, %p133
      %p135 = scmp.ne.s32.totalorder %s124, %s125
      %p136 = scmp.eq.s32.totalorder %s27, 0
      %p137 = por %p135, %p136
      %p138 = scmp.ne.s32.totalorder %s124, %s125
      %p139 = scmp.eq.s32.totalorder %s28, 1
      %p140 = por %p138, %p139
      %p142 = scmp.ne.s32.totalorder %s125, %s141
      %p143 = scmp.eq.s32.totalorder %s28, 0
      %p144 = por %p142, %p143
      %s145 = ssub.s32 %s22, %s29
      %p146 = scmp.eq.s32.totalorder %s145, 0
      %s148 = sadd.s32 %s147, 1
      %s149 = scalar_select %p146, %s147, %s148
      %p152 = pneg %p146
      %p153 = scmp.eq.s32.totalorder %s22, 1
      %p154 = por %p152, %p153
      %p155 = scmp.ne.s32.totalorder %s147, %s150
      %p156 = scmp.eq.s32.totalorder %s22, 0
      %p157 = por %p155, %p156
      %p158 = scmp.ne.s32.totalorder %s147, %s150
      %p159 = scmp.eq.s32.totalorder %s27, 1
      %p160 = por %p158, %p159
      %p161 = scmp.ne.s32.totalorder %s150, %s151
      %p162 = scmp.eq.s32.totalorder %s27, 0
      %p163 = por %p161, %p162
      %p164 = scmp.ne.s32.totalorder %s150, %s151
      %p165 = scmp.eq.s32.totalorder %s28, 1
      %p166 = por %p164, %p165
      %p168 = scmp.ne.s32.totalorder %s151, %s167
      %p169 = scmp.eq.s32.totalorder %s28, 0
      %p170 = por %p168, %p169
      %p171 = scmp.le.s32.totalorder 1, %s22
      %p172 = scmp.lt.s32.totalorder %s22, 3
      %p173 = pnand %p171, %p172
      %p174 = pneg %p173
      // Predicated region
      $region9: #{tpu_custom_call.1} parent=5 // pred_check
        _
      $region10: #{tpu_custom_call.1} parent=5 // pred_check_branch
        %176 = sbr.rel (%p173) target = $region12
      $region11: #{tpu_custom_call.1} parent=5 // pred_region
        %s177 = ssub.s32 %s22, 1
        // Predicated region
        $region13: #{tpu_custom_call.1} parent=11 // pred_check
          %p178 = pneg %p69
        $region14: #{tpu_custom_call.1} parent=11 // pred_check_branch
          %180 = sbr.rel (%p178) target = $region16
        $region15: #{tpu_custom_call.1} parent=11 // pred_region
          %s182 = ssub.s32 2048, 2048
          %183 = vsyncadd [#allocation6], %s182
          %s184 = sshll.u32 [#allocation5], 4
          %s185 = int_to_ptr.vmem [resolvable:$true] %s184
          %190 = dma.hbm_to_vmem [thread:$0]  %s1, 2048, %s185, [#allocation6], 128, 128, 8
        $region16: #{tpu_custom_call.1} parent=11 // pred_fallthru
          _
        // Predicated region
        $region17: #{tpu_custom_call.1} parent=11 // pred_check
          %p191 = pneg %p90
        $region18: #{tpu_custom_call.1} parent=11 // pred_check_branch
          %193 = sbr.rel (%p191) target = $region20
        $region19: #{tpu_custom_call.1} parent=11 // pred_region
          %s195 = ssub.s32 2048, 2048
          %196 = vsyncadd [#allocation6], %s195
          %s197 = sshll.u32 [#allocation7], 4
          %s198 = int_to_ptr.vmem [resolvable:$true] %s197
          %203 = dma.hbm_to_vmem [thread:$0]  %s2, 2048, %s198, [#allocation6], 128, 128, 8
        $region20: #{tpu_custom_call.1} parent=11 // pred_fallthru
          _
        // Predicated region
        $region21: #{tpu_custom_call.1} parent=11 // pred_check
          %p204 = pneg %p111
        $region22: #{tpu_custom_call.1} parent=11 // pred_check_branch
          %206 = sbr.rel (%p204) target = $region24
        $region23: #{tpu_custom_call.1} parent=11 // pred_region
          _
        $region24: #{tpu_custom_call.1} parent=11 // pred_fallthru
          _
      $region12: #{tpu_custom_call.1} parent=5 // pred_fallthru
        _
      %p207 = scmp.lt.s32.totalorder %s22, 2
      // Predicated region
      $region25: #{tpu_custom_call.1} parent=5 // pred_check
        %p208 = pneg %p207
      $region26: #{tpu_custom_call.1} parent=5 // pred_check_branch
        %210 = sbr.rel (%p208) target = $region28
      $region27: #{tpu_custom_call.1} parent=5 // pred_region
        // Predicated region
        $region29: #{tpu_custom_call.1} parent=27 // pred_check
          %p211 = pneg %p42
        $region30: #{tpu_custom_call.1} parent=27 // pred_check_branch
          %213 = sbr.rel (%p211) target = $region32
        $region31: #{tpu_custom_call.1} parent=27 // pred_region
          %s214 = sand.u32 %s32, 1
          %s215 = scalar_lea.sflag [#allocation3], %s214
          %s216 = sand.u32 %s32, 1
          %s217 = smul.addr %s216, 128
          %s218 = scalar_lea.vmem [#allocation2], %s217
          %s219 = smul.u32 16, %s22
          %s221 = ssub.s32 2048, 2048
          %222 = vsyncadd %s215, %s221
          %s223 = smul.addr %s219, 128
          %s224 = scalar_lea.hbm %s0, %s223
          %s225 = sshll.u32 %s218, 4
          %s226 = int_to_ptr.vmem [resolvable:$true] %s225
          %231 = dma.hbm_to_vmem [thread:$0]  %s224, 2048, %s226, %s215, 128, 128, 8
        $region32: #{tpu_custom_call.1} parent=27 // pred_fallthru
          _
      $region28: #{tpu_custom_call.1} parent=5 // pred_fallthru
        _
      %p232 = scmp.le.s32.totalorder 1, %s22
      %p233 = scmp.lt.s32.totalorder %s22, 3
      %p234 = pnand %p232, %p233
      %p235 = pneg %p234
      // Predicated region
      $region33: #{tpu_custom_call.1} parent=5 // pred_check
        _
      $region34: #{tpu_custom_call.1} parent=5 // pred_check_branch
        %237 = sbr.rel (%p234) target = $region36
      $region35: #{tpu_custom_call.1} parent=5 // pred_region
        %s238 = ssub.s32 %s22, 1
        %s239 = sand.u32 %s35, 1
        %s240 = scalar_lea.sflag [#allocation3], %s239
        %s241 = sand.u32 %s35, 1
        %s242 = smul.addr %s241, 128
        %s243 = scalar_lea.vmem [#allocation2], %s242
        // Predicated region
        $region37: #{tpu_custom_call.1} parent=35 // pred_check
          %p244 = pneg %p48
        $region38: #{tpu_custom_call.1} parent=35 // pred_check_branch
          %246 = sbr.rel (%p244) target = $region40
        $region39: #{tpu_custom_call.1} parent=35 // pred_region
          %247 = dma.done %s240, 2048
        $region40: #{tpu_custom_call.1} parent=35 // pred_fallthru
          _
        // Predicated region
        $region41: #{tpu_custom_call.1} parent=35 // pred_check
          %p248 = pneg %p69
        $region42: #{tpu_custom_call.1} parent=35 // pred_check_branch
          %250 = sbr.rel (%p248) target = $region44
        $region43: #{tpu_custom_call.1} parent=35 // pred_region
          %251 = dma.done [#allocation6], 2048
        $region44: #{tpu_custom_call.1} parent=35 // pred_fallthru
          _
        // Predicated region
        $region45: #{tpu_custom_call.1} parent=35 // pred_check
          %p252 = pneg %p90
        $region46: #{tpu_custom_call.1} parent=35 // pred_check_branch
          %254 = sbr.rel (%p252) target = $region48
        $region47: #{tpu_custom_call.1} parent=35 // pred_region
          %255 = dma.done [#allocation6], 2048
        $region48: #{tpu_custom_call.1} parent=35 // pred_fallthru
          _
        %s256 = sand.u32 %s35, 1
        %s257 = scalar_lea.sflag [#allocation3], %s256
        %s258 = sand.u32 %s35, 1
        %s259 = smul.addr %s258, 128
        %s260 = scalar_lea.vmem [#allocation2], %s259
        %p261 = pneg %p48
        %p262 = pneg %p45
        %p263 = pneg %p69
        %p264 = pneg %p66
        %p265 = pneg %p90
        %p266 = pneg %p87
        %p267 = pneg %p111
        %p268 = pneg %p108
        %p269 = pneg %p137
        %p270 = pneg %p134
        %s271 = sand.u32 %s124, 1
        %s272 = scalar_lea.sflag [#allocation4], %s271
        %s273 = sand.u32 %s124, 1
        %s274 = smul.addr %s273, 128
        %s275 = scalar_lea.vmem [#allocation8], %s274
        %p276 = pneg %p163
        %p277 = pneg %p160
        %s278 = sand.u32 %s150, 1
        %s279 = scalar_lea.sflag [#allocation10], %s278
        %s280 = sand.u32 %s150, 1
        %s281 = smul.addr %s280, 128
        %s282 = scalar_lea.vmem [#allocation9], %s281
        %s283 = smul.u32 16, %s27
        %s284 = smul.u32 16, %s27
        %s285 = smul.u32 16, %s27
        %v286 = vld [vmem:[%s243] sm:$0xff]
        %v287 = vld [vmem:[%s243 + $0x8] sm:$0xff]
        %v288 = vld [vmem:[%s243 + $0x10] sm:$0xff]
        %v289 = vld [vmem:[%s243 + $0x18] sm:$0xff]
        %v290 = vld [vmem:[%s243 + $0x20] sm:$0xff]
        %v291 = vld [vmem:[%s243 + $0x28] sm:$0xff]
        %v292 = vld [vmem:[%s243 + $0x30] sm:$0xff]
        %v293 = vld [vmem:[%s243 + $0x38] sm:$0xff]
        %v294 = vld [vmem:[%s243 + $0x40] sm:$0xff]
        %v295 = vld [vmem:[%s243 + $0x48] sm:$0xff]
        %v296 = vld [vmem:[%s243 + $0x50] sm:$0xff]
        %v297 = vld [vmem:[%s243 + $0x58] sm:$0xff]
        %v298 = vld [vmem:[%s243 + $0x60] sm:$0xff]
        %v299 = vld [vmem:[%s243 + $0x68] sm:$0xff]
        %v300 = vld [vmem:[%s243 + $0x70] sm:$0xff]
        %v301 = vld [vmem:[%s243 + $0x78] sm:$0xff]
        %v302 = vld [vmem:[#allocation5] sm:$0xff]
        %v303 = vld [vmem:[#allocation5 + $0x8] sm:$0xff]
        %v304 = vld [vmem:[#allocation5 + $0x10] sm:$0xff]
        %v305 = vld [vmem:[#allocation5 + $0x18] sm:$0xff]
        %v306 = vld [vmem:[#allocation5 + $0x20] sm:$0xff]
        %v307 = vld [vmem:[#allocation5 + $0x28] sm:$0xff]
        %v308 = vld [vmem:[#allocation5 + $0x30] sm:$0xff]
        %v309 = vld [vmem:[#allocation5 + $0x38] sm:$0xff]
        %v310 = vld [vmem:[#allocation5 + $0x40] sm:$0xff]
        %v311 = vld [vmem:[#allocation5 + $0x48] sm:$0xff]
        %v312 = vld [vmem:[#allocation5 + $0x50] sm:$0xff]
        %v313 = vld [vmem:[#allocation5 + $0x58] sm:$0xff]
        %v314 = vld [vmem:[#allocation5 + $0x60] sm:$0xff]
        %v315 = vld [vmem:[#allocation5 + $0x68] sm:$0xff]
        %v316 = vld [vmem:[#allocation5 + $0x70] sm:$0xff]
        %v317 = vld [vmem:[#allocation5 + $0x78] sm:$0xff]
        %318 = vmatprep.subr.mxu0 0.0
        %319 = vmatpush1.msra.mxu0 %v302
        %320 = vmatprep.subr.mxu0 0.0
        %321 = vmatpush1.msra.mxu0 %v303
        %322 = vmatprep.subr.mxu0 0.0
        %323 = vmatpush1.msra.mxu0 %v304
        %324 = vmatprep.subr.mxu0 0.0
        %325 = vmatpush1.msra.mxu0 %v305
        %326 = vmatprep.subr.mxu0 0.0
        %327 = vmatpush1.msra.mxu0 %v306
        %328 = vmatprep.subr.mxu0 0.0
        %329 = vmatpush1.msra.mxu0 %v307
        %330 = vmatprep.subr.mxu0 0.0
        %331 = vmatpush1.msra.mxu0 %v308
        %332 = vmatprep.subr.mxu0 0.0
        %333 = vmatpush1.msra.mxu0 %v309
        %334 = vmatprep.subr.mxu0 0.0
        %335 = vmatpush1.msra.mxu0 %v310
        %336 = vmatprep.subr.mxu0 0.0
        %337 = vmatpush1.msra.mxu0 %v311
        %338 = vmatprep.subr.mxu0 0.0
        %339 = vmatpush1.msra.mxu0 %v312
        %340 = vmatprep.subr.mxu0 0.0
        %341 = vmatpush1.msra.mxu0 %v313
        %342 = vmatprep.subr.mxu0 0.0
        %343 = vmatpush1.msra.mxu0 %v314
        %344 = vmatprep.subr.mxu0 0.0
        %345 = vmatpush1.msra.mxu0 %v315
        %346 = vmatprep.subr.mxu0 0.0
        %347 = vmatpush1.msra.mxu0 %v316
        %348 = vmatprep.subr.mxu0 0.0
        %349 = vmatpush1.msra.mxu0 %v317
        %350 = vmatprep.subr.mxu0 0.0
        %351 = vmatpush1.msra.mxu0 0.0
        %352 = vmatprep.subr.mxu0 0.0
        %353 = vmatpush1.msra.mxu0 0.0
        %354 = vmatprep.subr.mxu0 0.0
        %355 = vmatpush1.msra.mxu0 0.0
        %356 = vmatprep.subr.mxu0 0.0
        %357 = vmatpush1.msra.mxu0 0.0
        %358 = vmatprep.subr.mxu0 0.0
        %359 = vmatpush1.msra.mxu0 0.0
        %360 = vmatprep.subr.mxu0 0.0
        %361 = vmatpush1.msra.mxu0 0.0
        %362 = vmatprep.subr.mxu0 0.0
        %363 = vmatpush1.msra.mxu0 0.0
        %364 = vmatprep.subr.mxu0 0.0
        %365 = vmatpush1.msra.mxu0 0.0
        %366 = vmatprep.subr.mxu0 0.0
        %367 = vmatpush1.msra.mxu0 0.0
        %368 = vmatprep.subr.mxu0 0.0
        %369 = vmatpush1.msra.mxu0 0.0
        %370 = vmatprep.subr.mxu0 0.0
        %371 = vmatpush1.msra.mxu0 0.0
        %372 = vmatprep.subr.mxu0 0.0
        %373 = vmatpush1.msra.mxu0 0.0
        %374 = vmatprep.subr.mxu0 0.0
        %375 = vmatpush1.msra.mxu0 0.0
        %376 = vmatprep.subr.mxu0 0.0
        %377 = vmatpush1.msra.mxu0 0.0
        %378 = vmatprep.subr.mxu0 0.0
        %379 = vmatpush1.msra.mxu0 0.0
        %380 = vmatprep.subr.mxu0 0.0
        %381 = vmatpush1.msra.mxu0 0.0
        %382 = vmatprep.mubr.f32.mxu0 0.0
        %383 = vmatmul.mubr.f32.gmra.mrb[0].mxu0 %v286
        %v384 = vpop.f32.mrb[0].mxu0
        %v385 = vadd.f32 0.0, %v384
        %v386 = vpop.f32.mrb[0].mxu0
        %387 = vmatprep.mubr.f32.mxu0 0.0
        %388 = vmatmul.mubr.f32.gmra.mrb[0].mxu0 %v287
        %v389 = vpop.f32.mrb[0].mxu0
        %v390 = vadd.f32 0.0, %v389
        %v391 = vpop.f32.mrb[0].mxu0
        %392 = vmatprep.mubr.f32.mxu0 0.0
        %393 = vmatmul.mubr.f32.gmra.mrb[0].mxu0 %v288
        %v394 = vpop.f32.mrb[0].mxu0
        %v395 = vadd.f32 0.0, %v394
        %v396 = vpop.f32.mrb[0].mxu0
        %397 = vmatprep.mubr.f32.mxu0 0.0
        %398 = vmatmul.mubr.f32.gmra.mrb[0].mxu0 %v289
        %v399 = vpop.f32.mrb[0].mxu0
        %v400 = vadd.f32 0.0, %v399
        %v401 = vpop.f32.mrb[0].mxu0
        %402 = vmatprep.mubr.f32.mxu0 0.0
        %403 = vmatmul.mubr.f32.gmra.mrb[0].mxu0 %v290
        %v404 = vpop.f32.mrb[0].mxu0
        %v405 = vadd.f32 0.0, %v404
        %v406 = vpop.f32.mrb[0].mxu0
        %407 = vmatprep.mubr.f32.mxu0 0.0
        %408 = vmatmul.mubr.f32.gmra.mrb[0].mxu0 %v291
        %v409 = vpop.f32.mrb[0].mxu0
        %v410 = vadd.f32 0.0, %v409
        %v411 = vpop.f32.mrb[0].mxu0
        %412 = vmatprep.mubr.f32.mxu0 0.0
        %413 = vmatmul.mubr.f32.gmra.mrb[0].mxu0 %v292
        %v414 = vpop.f32.mrb[0].mxu0
        %v415 = vadd.f32 0.0, %v414
        %v416 = vpop.f32.mrb[0].mxu0
        %417 = vmatprep.mubr.f32.mxu0 0.0
        %418 = vmatmul.mubr.f32.gmra.mrb[0].mxu0 %v293
        %v419 = vpop.f32.mrb[0].mxu0
        %v420 = vadd.f32 0.0, %v419
        %v421 = vpop.f32.mrb[0].mxu0
        %422 = vmatprep.mubr.f32.mxu0 0.0
        %423 = vmatmul.mubr.f32.gmra.mrb[0].mxu0 %v294
        %v424 = vpop.f32.mrb[0].mxu0
        %v425 = vadd.f32 0.0, %v424
        %v426 = vpop.f32.mrb[0].mxu0
        %427 = vmatprep.mubr.f32.mxu0 0.0
        %428 = vmatmul.mubr.f32.gmra.mrb[0].mxu0 %v295
        %v429 = vpop.f32.mrb[0].mxu0
        %v430 = vadd.f32 0.0, %v429
        %v431 = vpop.f32.mrb[0].mxu0
        %432 = vmatprep.mubr.f32.mxu0 0.0
        %433 = vmatmul.mubr.f32.gmra.mrb[0].mxu0 %v296
        %v434 = vpop.f32.mrb[0].mxu0
        %v435 = vadd.f32 0.0, %v434
        %v436 = vpop.f32.mrb[0].mxu0
        %437 = vmatprep.mubr.f32.mxu0 0.0
        %438 = vmatmul.mubr.f32.gmra.mrb[0].mxu0 %v297
        %v439 = vpop.f32.mrb[0].mxu0
        %v440 = vadd.f32 0.0, %v439
        %v441 = vpop.f32.mrb[0].mxu0
        %442 = vmatprep.mubr.f32.mxu0 0.0
        %443 = vmatmul.mubr.f32.gmra.mrb[0].mxu0 %v298
        %v444 = vpop.f32.mrb[0].mxu0
        %v445 = vadd.f32 0.0, %v444
        %v446 = vpop.f32.mrb[0].mxu0
        %447 = vmatprep.mubr.f32.mxu0 0.0
        %448 = vmatmul.mubr.f32.gmra.mrb[0].mxu0 %v299
        %v449 = vpop.f32.mrb[0].mxu0
        %v450 = vadd.f32 0.0, %v449
        %v451 = vpop.f32.mrb[0].mxu0
        %452 = vmatprep.mubr.f32.mxu0 0.0
        %453 = vmatmul.mubr.f32.gmra.mrb[0].mxu0 %v300
        %v454 = vpop.f32.mrb[0].mxu0
        %v455 = vadd.f32 0.0, %v454
        %v456 = vpop.f32.mrb[0].mxu0
        %457 = vmatprep.mubr.f32.mxu0 0.0
        %458 = vmatmul.mubr.f32.gmra.mrb[0].mxu0 %v301
        %v459 = vpop.f32.mrb[0].mxu0
        %v460 = vadd.f32 0.0, %v459
        %v461 = vpop.f32.mrb[0].mxu0
        %462 = vdwg.mxu0
        %463 = vst [vmem:[%s275] sm:$0xff] %v385
        %464 = vst [vmem:[%s275 + $0x8] sm:$0xff] %v390
        %465 = vst [vmem:[%s275 + $0x10] sm:$0xff] %v395
        %466 = vst [vmem:[%s275 + $0x18] sm:$0xff] %v400
        %467 = vst [vmem:[%s275 + $0x20] sm:$0xff] %v405
        %468 = vst [vmem:[%s275 + $0x28] sm:$0xff] %v410
        %469 = vst [vmem:[%s275 + $0x30] sm:$0xff] %v415
        %470 = vst [vmem:[%s275 + $0x38] sm:$0xff] %v420
        %471 = vst [vmem:[%s275 + $0x40] sm:$0xff] %v425
        %472 = vst [vmem:[%s275 + $0x48] sm:$0xff] %v430
        %473 = vst [vmem:[%s275 + $0x50] sm:$0xff] %v435
        %474 = vst [vmem:[%s275 + $0x58] sm:$0xff] %v440
        %475 = vst [vmem:[%s275 + $0x60] sm:$0xff] %v445
        %476 = vst [vmem:[%s275 + $0x68] sm:$0xff] %v450
        %477 = vst [vmem:[%s275 + $0x70] sm:$0xff] %v455
        %478 = vst [vmem:[%s275 + $0x78] sm:$0xff] %v460
        %v479 = vld [vmem:[#allocation7] sm:$0xff]
        %v480 = vld [vmem:[#allocation7 + $0x8] sm:$0xff]
        %v481 = vld [vmem:[#allocation7 + $0x10] sm:$0xff]
        %v482 = vld [vmem:[#allocation7 + $0x18] sm:$0xff]
        %v483 = vld [vmem:[#allocation7 + $0x20] sm:$0xff]
        %v484 = vld [vmem:[#allocation7 + $0x28] sm:$0xff]
        %v485 = vld [vmem:[#allocation7 + $0x30] sm:$0xff]
        %v486 = vld [vmem:[#allocation7 + $0x38] sm:$0xff]
        %v487 = vld [vmem:[#allocation7 + $0x40] sm:$0xff]
        %v488 = vld [vmem:[#allocation7 + $0x48] sm:$0xff]
        %v489 = vld [vmem:[#allocation7 + $0x50] sm:$0xff]
        %v490 = vld [vmem:[#allocation7 + $0x58] sm:$0xff]
        %v491 = vld [vmem:[#allocation7 + $0x60] sm:$0xff]
        %v492 = vld [vmem:[#allocation7 + $0x68] sm:$0xff]
        %v493 = vld [vmem:[#allocation7 + $0x70] sm:$0xff]
        %v494 = vld [vmem:[#allocation7 + $0x78] sm:$0xff]
        %v495 = vld [vmem:[%s3] sm:$0x1]
        %v497 = vlaneseq
        %v498 = vshrl.u32 %v497, 7
        %v499 = vsub.s32 0, %v498
        %v500 = vrot.slane %v495, %v499
        %502 = vmatprep.subr.mxu0 0.0
        %503 = vmatpush1.msra.mxu0 %v479
        %504 = vmatprep.subr.mxu0 0.0
        %505 = vmatpush1.msra.mxu0 %v480
        %506 = vmatprep.subr.mxu0 0.0
        %507 = vmatpush1.msra.mxu0 %v481
        %508 = vmatprep.subr.mxu0 0.0
        %509 = vmatpush1.msra.mxu0 %v482
        %510 = vmatprep.subr.mxu0 0.0
        %511 = vmatpush1.msra.mxu0 %v483
        %512 = vmatprep.subr.mxu0 0.0
        %513 = vmatpush1.msra.mxu0 %v484
        %514 = vmatprep.subr.mxu0 0.0
        %515 = vmatpush1.msra.mxu0 %v485
        %516 = vmatprep.subr.mxu0 0.0
        %517 = vmatpush1.msra.mxu0 %v486
        %518 = vmatprep.subr.mxu0 0.0
        %519 = vmatpush1.msra.mxu0 %v487
        %520 = vmatprep.subr.mxu0 0.0
        %521 = vmatpush1.msra.mxu0 %v488
        %522 = vmatprep.subr.mxu0 0.0
        %523 = vmatpush1.msra.mxu0 %v489
        %524 = vmatprep.subr.mxu0 0.0
        %525 = vmatpush1.msra.mxu0 %v490
        %526 = vmatprep.subr.mxu0 0.0
        %527 = vmatpush1.msra.mxu0 %v491
        %528 = vmatprep.subr.mxu0 0.0
        %529 = vmatpush1.msra.mxu0 %v492
        %530 = vmatprep.subr.mxu0 0.0
        %531 = vmatpush1.msra.mxu0 %v493
        %532 = vmatprep.subr.mxu0 0.0
        %533 = vmatpush1.msra.mxu0 %v494
        %534 = vmatprep.subr.mxu0 0.0
        %535 = vmatpush1.msra.mxu0 0.0
        %536 = vmatprep.subr.mxu0 0.0
        %537 = vmatpush1.msra.mxu0 0.0
        %538 = vmatprep.subr.mxu0 0.0
        %539 = vmatpush1.msra.mxu0 0.0
        %540 = vmatprep.subr.mxu0 0.0
        %541 = vmatpush1.msra.mxu0 0.0
        %542 = vmatprep.subr.mxu0 0.0
        %543 = vmatpush1.msra.mxu0 0.0
        %544 = vmatprep.subr.mxu0 0.0
        %545 = vmatpush1.msra.mxu0 0.0
        %546 = vmatprep.subr.mxu0 0.0
        %547 = vmatpush1.msra.mxu0 0.0
        %548 = vmatprep.subr.mxu0 0.0
        %549 = vmatpush1.msra.mxu0 0.0
        %550 = vmatprep.subr.mxu0 0.0
        %551 = vmatpush1.msra.mxu0 0.0
        %552 = vmatprep.subr.mxu0 0.0
        %553 = vmatpush1.msra.mxu0 0.0
        %554 = vmatprep.subr.mxu0 0.0
        %555 = vmatpush1.msra.mxu0 0.0
        %556 = vmatprep.subr.mxu0 0.0
        %557 = vmatpush1.msra.mxu0 0.0
        %558 = vmatprep.subr.mxu0 0.0
        %559 = vmatpush1.msra.mxu0 0.0
        %560 = vmatprep.subr.mxu0 0.0
        %561 = vmatpush1.msra.mxu0 0.0
        %562 = vmatprep.subr.mxu0 0.0
        %563 = vmatpush1.msra.mxu0 0.0
        %564 = vmatprep.subr.mxu0 0.0
        %565 = vmatpush1.msra.mxu0 0.0
        %566 = vmatprep.mubr.f32.mxu0 0.0
        %567 = vmatmul.mubr.f32.gmra.mrb[0].mxu0 %v286
        %v568 = vpop.f32.mrb[0].mxu0
        %v569 = vadd.f32 %v500, %v568
        %v570 = vpop.f32.mrb[0].mxu0
        %571 = vmatprep.mubr.f32.mxu0 0.0
        %572 = vmatmul.mubr.f32.gmra.mrb[0].mxu0 %v287
        %v573 = vpop.f32.mrb[0].mxu0
        %v574 = vadd.f32 %v500, %v573
        %v575 = vpop.f32.mrb[0].mxu0
        %576 = vmatprep.mubr.f32.mxu0 0.0
        %577 = vmatmul.mubr.f32.gmra.mrb[0].mxu0 %v288
        %v578 = vpop.f32.mrb[0].mxu0
        %v579 = vadd.f32 %v500, %v578
        %v580 = vpop.f32.mrb[0].mxu0
        %581 = vmatprep.mubr.f32.mxu0 0.0
        %582 = vmatmul.mubr.f32.gmra.mrb[0].mxu0 %v289
        %v583 = vpop.f32.mrb[0].mxu0
        %v584 = vadd.f32 %v500, %v583
        %v585 = vpop.f32.mrb[0].mxu0
        %586 = vmatprep.mubr.f32.mxu0 0.0
        %587 = vmatmul.mubr.f32.gmra.mrb[0].mxu0 %v290
        %v588 = vpop.f32.mrb[0].mxu0
        %v589 = vadd.f32 %v500, %v588
        %v590 = vpop.f32.mrb[0].mxu0
        %591 = vmatprep.mubr.f32.mxu0 0.0
        %592 = vmatmul.mubr.f32.gmra.mrb[0].mxu0 %v291
        %v593 = vpop.f32.mrb[0].mxu0
        %v594 = vadd.f32 %v500, %v593
        %v595 = vpop.f32.mrb[0].mxu0
        %596 = vmatprep.mubr.f32.mxu0 0.0
        %597 = vmatmul.mubr.f32.gmra.mrb[0].mxu0 %v292
        %v598 = vpop.f32.mrb[0].mxu0
        %v599 = vadd.f32 %v500, %v598
        %v600 = vpop.f32.mrb[0].mxu0
        %601 = vmatprep.mubr.f32.mxu0 0.0
        %602 = vmatmul.mubr.f32.gmra.mrb[0].mxu0 %v293
        %v603 = vpop.f32.mrb[0].mxu0
        %v604 = vadd.f32 %v500, %v603
        %v605 = vpop.f32.mrb[0].mxu0
        %606 = vmatprep.mubr.f32.mxu0 0.0
        %607 = vmatmul.mubr.f32.gmra.mrb[0].mxu0 %v294
        %v608 = vpop.f32.mrb[0].mxu0
        %v609 = vadd.f32 %v500, %v608
        %v610 = vpop.f32.mrb[0].mxu0
        %611 = vmatprep.mubr.f32.mxu0 0.0
        %612 = vmatmul.mubr.f32.gmra.mrb[0].mxu0 %v295
        %v613 = vpop.f32.mrb[0].mxu0
        %v614 = vadd.f32 %v500, %v613
        %v615 = vpop.f32.mrb[0].mxu0
        %616 = vmatprep.mubr.f32.mxu0 0.0
        %617 = vmatmul.mubr.f32.gmra.mrb[0].mxu0 %v296
        %v618 = vpop.f32.mrb[0].mxu0
        %v619 = vadd.f32 %v500, %v618
        %v620 = vpop.f32.mrb[0].mxu0
        %621 = vmatprep.mubr.f32.mxu0 0.0
        %622 = vmatmul.mubr.f32.gmra.mrb[0].mxu0 %v297
        %v623 = vpop.f32.mrb[0].mxu0
        %v624 = vadd.f32 %v500, %v623
        %v625 = vpop.f32.mrb[0].mxu0
        %626 = vmatprep.mubr.f32.mxu0 0.0
        %627 = vmatmul.mubr.f32.gmra.mrb[0].mxu0 %v298
        %v628 = vpop.f32.mrb[0].mxu0
        %v629 = vadd.f32 %v500, %v628
        %v630 = vpop.f32.mrb[0].mxu0
        %631 = vmatprep.mubr.f32.mxu0 0.0
        %632 = vmatmul.mubr.f32.gmra.mrb[0].mxu0 %v299
        %v633 = vpop.f32.mrb[0].mxu0
        %v634 = vadd.f32 %v500, %v633
        %v635 = vpop.f32.mrb[0].mxu0
        %636 = vmatprep.mubr.f32.mxu0 0.0
        %637 = vmatmul.mubr.f32.gmra.mrb[0].mxu0 %v300
        %v638 = vpop.f32.mrb[0].mxu0
        %v639 = vadd.f32 %v500, %v638
        %v640 = vpop.f32.mrb[0].mxu0
        %641 = vmatprep.mubr.f32.mxu0 0.0
        %642 = vmatmul.mubr.f32.gmra.mrb[0].mxu0 %v301
        %v643 = vpop.f32.mrb[0].mxu0
        %v644 = vadd.f32 %v500, %v643
        %v645 = vpop.f32.mrb[0].mxu0
        %646 = vdwg.mxu0
        %647 = vst [vmem:[%s282] sm:$0xff] %v569
        %648 = vst [vmem:[%s282 + $0x8] sm:$0xff] %v574
        %649 = vst [vmem:[%s282 + $0x10] sm:$0xff] %v579
        %650 = vst [vmem:[%s282 + $0x18] sm:$0xff] %v584
        %651 = vst [vmem:[%s282 + $0x20] sm:$0xff] %v589
        %652 = vst [vmem:[%s282 + $0x28] sm:$0xff] %v594
        %653 = vst [vmem:[%s282 + $0x30] sm:$0xff] %v599
        %654 = vst [vmem:[%s282 + $0x38] sm:$0xff] %v604
        %655 = vst [vmem:[%s282 + $0x40] sm:$0xff] %v609
        %656 = vst [vmem:[%s282 + $0x48] sm:$0xff] %v614
        %657 = vst [vmem:[%s282 + $0x50] sm:$0xff] %v619
        %658 = vst [vmem:[%s282 + $0x58] sm:$0xff] %v624
        %659 = vst [vmem:[%s282 + $0x60] sm:$0xff] %v629
        %660 = vst [vmem:[%s282 + $0x68] sm:$0xff] %v634
        %661 = vst [vmem:[%s282 + $0x70] sm:$0xff] %v639
        %662 = vst [vmem:[%s282 + $0x78] sm:$0xff] %v644
        %s663 = sand.u32 %s124, 1
        %s664 = scalar_lea.sflag [#allocation4], %s663
        %s665 = sand.u32 %s124, 1
        %s666 = smul.addr %s665, 128
        %s667 = scalar_lea.vmem [#allocation8], %s666
        %s668 = sand.u32 %s150, 1
        %s669 = scalar_lea.sflag [#allocation10], %s668
        %s670 = sand.u32 %s150, 1
        %s671 = smul.addr %s670, 128
        %s672 = scalar_lea.vmem [#allocation9], %s671
        // Predicated region
        $region49: #{tpu_custom_call.1} parent=35 // pred_check
          %p673 = pneg %p134
        $region50: #{tpu_custom_call.1} parent=35 // pred_check_branch
          %675 = sbr.rel (%p673) target = $region52
        $region51: #{tpu_custom_call.1} parent=35 // pred_region
          %s676 = smul.u32 16, %s27
          %s678 = ssub.s32 2048, 2048
          %679 = vsyncadd %s664, %s678
          %s680 = smul.addr %s676, 128
          %s681 = scalar_lea.hbm %s4, %s680
          %s682 = sshll.u32 %s667, 4
          %s683 = int_to_ptr.vmem [resolvable:$true] %s682
          %688 = dma.vmem_to_hbm [thread:$0]  %s683, 2048, %s681, %s664, 128, 128, 8
        $region52: #{tpu_custom_call.1} parent=35 // pred_fallthru
          _
        // Predicated region
        $region53: #{tpu_custom_call.1} parent=35 // pred_check
          %p689 = pneg %p160
        $region54: #{tpu_custom_call.1} parent=35 // pred_check_branch
          %691 = sbr.rel (%p689) target = $region56
        $region55: #{tpu_custom_call.1} parent=35 // pred_region
          %s692 = smul.u32 16, %s27
          %s694 = ssub.s32 2048, 2048
          %695 = vsyncadd %s669, %s694
          %s696 = smul.addr %s692, 128
          %s697 = scalar_lea.hbm %s5, %s696
          %s698 = sshll.u32 %s672, 4
          %s699 = int_to_ptr.vmem [resolvable:$true] %s698
          %704 = dma.vmem_to_hbm [thread:$0]  %s699, 2048, %s697, %s669, 128, 128, 8
        $region56: #{tpu_custom_call.1} parent=35 // pred_fallthru
          _
      $region36: #{tpu_custom_call.1} parent=5 // pred_fallthru
        _
      %p705 = scmp.le.s32.totalorder 2, %s22
      // Predicated region
      $region57: #{tpu_custom_call.1} parent=5 // pred_check
        %p706 = pneg %p705
      $region58: #{tpu_custom_call.1} parent=5 // pred_check_branch
        %708 = sbr.rel (%p706) target = $region60
      $region59: #{tpu_custom_call.1} parent=5 // pred_region
        %s709 = ssub.s32 %s22, 2
        // Predicated region
        $region61: #{tpu_custom_call.1} parent=59 // pred_check
          %p710 = pneg %p140
        $region62: #{tpu_custom_call.1} parent=59 // pred_check_branch
          %712 = sbr.rel (%p710) target = $region64
        $region63: #{tpu_custom_call.1} parent=59 // pred_region
          %s713 = sand.u32 %s125, 1
          %s714 = scalar_lea.sflag [#allocation4], %s713
          %s715 = sand.u32 %s125, 1
          %s716 = smul.addr %s715, 128
          %s717 = scalar_lea.vmem [#allocation8], %s716
          %718 = dma.done %s714, 2048
        $region64: #{tpu_custom_call.1} parent=59 // pred_fallthru
          _
        // Predicated region
        $region65: #{tpu_custom_call.1} parent=59 // pred_check
          %p719 = pneg %p166
        $region66: #{tpu_custom_call.1} parent=59 // pred_check_branch
          %721 = sbr.rel (%p719) target = $region68
        $region67: #{tpu_custom_call.1} parent=59 // pred_region
          %s722 = sand.u32 %s151, 1
          %s723 = scalar_lea.sflag [#allocation10], %s722
          %s724 = sand.u32 %s151, 1
          %s725 = smul.addr %s724, 128
          %s726 = scalar_lea.vmem [#allocation9], %s725
          %727 = dma.done %s723, 2048
        $region68: #{tpu_custom_call.1} parent=59 // pred_fallthru
          _
      $region60: #{tpu_custom_call.1} parent=5 // pred_fallthru
        _
    $region6: #{tpu_custom_call.1} parent=1 // loop_footer
      %s26 = sadd.s32 1, %s22
    $region7: #{tpu_custom_call.1} parent=1 // loop_footer_branch
      %21 = sbr.rel target = $region3
    $region8: #{tpu_custom_call.1} parent=1 // loop_exit
      _
    %728 = vsyncpa [#allocation3], 1
    %s729 = scalar_lea.sflag [#allocation3], 1
    %730 = vsyncpa %s729, 1
    %731 = vsyncpa [#allocation6], 1
    %732 = vsyncpa [#allocation4], 1
    %s733 = scalar_lea.sflag [#allocation4], 1
    %734 = vsyncpa %s733, 1
    %735 = vsyncpa [#allocation10], 1
    %s736 = scalar_lea.sflag [#allocation10], 1
    %737 = vsyncpa %s736, 1

</llo_original>
